<compile_context>
chip_gen: v7x
topology: tpu7x:2x2x1
jax: 0.10.0
libtpu: 0.0.40
codegen_flags: <defaults>
</compile_context>

<pallas_src>
import jax
import jax.numpy as jnp
from jax.experimental import pallas as pl
from jax.experimental.pallas import tpu as pltpu


# --------------------------------------------------------------------------
# Tiling helpers
# --------------------------------------------------------------------------

def _round_up(n, m):
    return -(-n // m) * m


def _largest_divisor_leq(n, cap, multiple_of=1):
    """Largest divisor d of n with d <= cap and d % multiple_of == 0 (or None)."""
    best = None
    d = 1
    while d * d <= n:
        if n % d == 0:
            for cand in (d, n // d):
                if cand <= cap and cand % multiple_of == 0 and (
                        best is None or cand > best):
                    best = cand
        d += 1
    return best


def _aligned_divisors_asc(n, multiple_of):
    """All divisors of n that are multiples of `multiple_of`, ascending."""
    out = set()
    d = 1
    while d * d <= n:
        if n % d == 0:
            for cand in (d, n // d):
                if cand % multiple_of == 0:
                    out.add(cand)
        d += 1
    return sorted(out)


def _sublane_multiple(dtype):
    # 8 sublanes for 4-byte, 16 for 2-byte, 32 for 1-byte dtypes.
    return max(8, 32 // jnp.dtype(dtype).itemsize)


def _padded_block_bytes(n, c, hw, dtype):
    """VMEM footprint of one (n, c, hw) block after lane/sublane padding."""
    itemsize = jnp.dtype(dtype).itemsize
    sub = _sublane_multiple(dtype)
    return n * _round_up(c, sub) * _round_up(hw, 128) * itemsize


def _physical_vmem_bytes():
    try:
        return int(pltpu.get_tpu_info().vmem_capacity_bytes)
    except Exception:
        return 64 * 1024 * 1024  # conservative default (v7x-sized)


def _choose_tiles(N, C, HW, dtype, target_bytes):
    """Return (n_tile, c_tile, hw_tile), exact divisors of (N, C, HW).

    All returned tiles keep the last two dims of every block either
    full-extent or (sublane, 128)-aligned, and the padded block bytes under
    `target_bytes` (except the guarded last-resort full-slab fallback).
    """
    itemsize = jnp.dtype(dtype).itemsize
    sub = _sublane_multiple(dtype)
    padded_hw = _round_up(HW, 128)

    # Case 1: whole (C, HW) slab fits -> fold several batch elements/block.
    slab = _padded_block_bytes(1, C, HW, dtype)
    if slab <= target_bytes:
        max_n = max(1, target_bytes // slab)
        if N >= 2:
            # keep >= 2 parallel grid steps so both v7x TensorCores get work
            max_n = min(max_n, max(1, N // 2))
        n_tile = _largest_divisor_leq(N, max_n, 1) or 1
        return n_tile, C, HW

    # Case 2: channel tiling with full HW rows (fully contiguous DMA).
    # Relaxed from 128-multiples to sublane multiples (output traffic is
    # negligible, DMA contiguity is what matters).
    max_c_padded = target_bytes // (padded_hw * itemsize)
    cap_c = (max_c_padded // sub) * sub
    if cap_c >= sub:
        c_tile = _largest_divisor_leq(C, cap_c, sub)
        if c_tile is not None:
            return 1, c_tile, HW

    # Case 3: huge C*HW -> chunk HW in 128-lane-aligned pieces (reduced over
    # the trailing "arbitrary" grid axis).  Prefer the longest contiguous HW
    # rows (smallest aligned c_tile first).
    c_candidates = _aligned_divisors_asc(C, sub)
    if C not in c_candidates:
        c_candidates = c_candidates + [C]
    for c_tile in c_candidates:
        max_hw_padded = target_bytes // (_round_up(c_tile, sub) * itemsize)
        cap_hw = (max_hw_padded // 128) * 128
        if cap_hw < 128:
            continue
        hw_tile = _largest_divisor_leq(HW, cap_hw, 128)
        if hw_tile is not None and hw_tile < HW:
            return 1, c_tile, hw_tile

    # Guarded last resort (e.g. HW has no fitting 128-multiple divisor):
    # process the full per-image slab; the wrapper raises vmem_limit_bytes.
    # TODO(synk): pathological shapes may still exceed physical VMEM here; a
    # masked pl.Element tiling would be needed to cover them.
    return 1, C, HW


# --------------------------------------------------------------------------
# Kernels
# --------------------------------------------------------------------------

def _build_full_kernel(inv_hw):
    """One block covers the entire HW extent: direct max / mean."""
    def kernel(x_ref, mx_ref, av_ref):
        x = x_ref[...]                                   # (n_tile, c_tile, HW)
        # Max in native dtype (bf16 stays bf16 on v6e/v7x; v5e widens anyway).
        mx_ref[...] = jnp.max(x, axis=-1).astype(mx_ref.dtype)
        # Sum widened to f32 inside the reduction (no f32 tile materialized).
        s = jnp.sum(x, axis=-1, dtype=jnp.float32)
        av_ref[...] = (s * inv_hw).astype(av_ref.dtype)
    return kernel


def _build_reduce_kernel(inv_hw):
    """HW is chunked along the trailing 'arbitrary' grid axis."""
    def kernel(x_ref, mx_ref, av_ref, max_acc, sum_acc):
        k = pl.program_id(2)

        @pl.when(k == 0)
        def _init():
            max_acc[...] = jnp.full_like(max_acc, -jnp.inf)
            sum_acc[...] = jnp.zeros_like(sum_acc)

        x = x_ref[...]                                   # (1, c_tile, hw_tile)
        max_acc[...] = jnp.maximum(max_acc[...],
                                   jnp.max(x, axis=-1).astype(jnp.float32))
        sum_acc[...] = sum_acc[...] + jnp.sum(x, axis=-1, dtype=jnp.float32)

        @pl.when(k == pl.num_programs(2) - 1)
        def _finalize():
            mx_ref[...] = max_acc[...].astype(mx_ref.dtype)
            av_ref[...] = (sum_acc[...] * inv_hw).astype(av_ref.dtype)
    return kernel


# --------------------------------------------------------------------------
# Wrapper
# --------------------------------------------------------------------------

def _input_spec(block_shape, index_map, want_extra_buffering):
    """BlockSpec with pipeline_mode=Buffered(3) when available / requested."""
    if want_extra_buffering and hasattr(pl, "Buffered"):
        try:
            return pl.BlockSpec(block_shape, index_map,
                                pipeline_mode=pl.Buffered(3))
        except TypeError:
            pass
    return pl.BlockSpec(block_shape, index_map)


def adaptive_concat_pool2d(x):
    """x: (N, C, H, W) -> (N, 2*C, 1, 1); same as torch.cat([mp(x), ap(x)], 1)."""
    if not jnp.issubdtype(x.dtype, jnp.floating):
        raise NotImplementedError(
            "adaptive_concat_pool2d: only floating dtypes are supported")

    N, C, H, W = x.shape
    HW = H * W
    itemsize = jnp.dtype(x.dtype).itemsize

    # VMEM budget derived from the chip's physical VMEM (v5e/v6e: 128 MiB,
    # v7x: 64 MiB), block target sized by *padded* bytes.
    phys_vmem = _physical_vmem_bytes()
    vmem_limit = min(phys_vmem // 2, 64 * 1024 * 1024)
    target_bytes = min(8 << 20, max(1 << 20, vmem_limit // 6))

    n_tile, c_tile, hw_tile = _choose_tiles(N, C, HW, x.dtype, target_bytes)
    block_bytes = _padded_block_bytes(n_tile, c_tile, hw_tile, x.dtype)

    x_flat = x.reshape(N, C, HW)                       # free row-major view
    inv_hw = 1.0 / float(HW)
    g_n, g_c = N // n_tile, C // c_tile

    # Outputs are written as (g_n, g_c, n_tile, c_tile) so every output block
    # spans its last two array dims exactly (layout fixed up in the wrapper).
    out_shape = (
        jax.ShapeDtypeStruct((g_n, g_c, n_tile, c_tile), x.dtype),  # max
        jax.ShapeDtypeStruct((g_n, g_c, n_tile, c_tile), x.dtype),  # avg
    )
    cost = pl.CostEstimate(
        flops=2 * N * C * HW,
        transcendentals=0,
        bytes_accessed=N * C * HW * itemsize + 2 * N * C * itemsize,
    )

    if hw_tile == HW:
        # --------- variant A: no HW reduction axis ---------
        grid = (g_n, g_c)
        steps = g_n * g_c
        buffered = steps >= 3 and 3 * block_bytes <= vmem_limit // 2
        n_buffers = 3 if buffered else 2
        vmem_limit = max(vmem_limit,
                         min(n_buffers * block_bytes + (1 << 20),
                             (phys_vmem * 3) // 4))

        mx4, av4 = pl.pallas_call(
            _build_full_kernel(inv_hw),
            out_shape=out_shape,
            grid_spec=pltpu.PrefetchScalarGridSpec(
                num_scalar_prefetch=0,
                grid=grid,
                in_specs=[
                    _input_spec((n_tile, c_tile, HW),
                                lambda n, c: (n, c, 0), buffered),
                ],
                out_specs=[
                    pl.BlockSpec((None, None, n_tile, c_tile),
                                 lambda n, c: (n, c, 0, 0)),
                    pl.BlockSpec((None, None, n_tile, c_tile),
                                 lambda n, c: (n, c, 0, 0)),
                ],
            ),
            compiler_params=pltpu.CompilerParams(
                dimension_semantics=("parallel", "parallel"),
                vmem_limit_bytes=vmem_limit,
            ),
            cost_estimate=cost,
        )(x_flat)
    else:
        # --------- variant B: reduce over HW chunks (trailing axis) ---------
        grid = (N, g_c, HW // hw_tile)
        steps = grid[0] * grid[1] * grid[2]
        buffered = steps >= 3 and 3 * block_bytes <= vmem_limit // 2
        n_buffers = 3 if buffered else 2
        vmem_limit = max(vmem_limit,
                         min(n_buffers * block_bytes + (1 << 20),
                             (phys_vmem * 3) // 4))

        mx4, av4 = pl.pallas_call(
            _build_reduce_kernel(inv_hw),
            out_shape=out_shape,
            grid_spec=pltpu.PrefetchScalarGridSpec(
                num_scalar_prefetch=0,
                grid=grid,
                in_specs=[
                    _input_spec((1, c_tile, hw_tile),
                                lambda n, c, k: (n, c, k), buffered),
                ],
                out_specs=[
                    pl.BlockSpec((None, None, 1, c_tile),
                                 lambda n, c, k: (n, c, 0, 0)),
                    pl.BlockSpec((None, None, 1, c_tile),
                                 lambda n, c, k: (n, c, 0, 0)),
                ],
                scratch_shapes=[
                    pltpu.VMEM((1, c_tile), jnp.float32),   # running max
                    pltpu.VMEM((1, c_tile), jnp.float32),   # running sum
                ],
            ),
            compiler_params=pltpu.CompilerParams(
                dimension_semantics=("parallel", "parallel", "arbitrary"),
                vmem_limit_bytes=vmem_limit,
            ),
            cost_estimate=cost,
        )(x_flat)

    # (g_n, g_c, n_tile, c_tile) -> (N, C); then channel-concat like torch.
    mx = mx4.transpose(0, 2, 1, 3).reshape(N, C)
    av = av4.transpose(0, 2, 1, 3).reshape(N, C)
    return jnp.concatenate([mx, av], axis=1).reshape(N, 2 * C, 1, 1)


# --------------------------------------------------------------------------
# Demo / self-check
# --------------------------------------------------------------------------

if __name__ == "__main__":
    key = jax.random.PRNGKey(0)
    N, C, H, W = 2, 4, 16, 16
    x = jax.random.normal(key, (N, C, H, W), dtype=jnp.float32)

    y = adaptive_concat_pool2d(x)
    y = jax.block_until_ready(y)

    # reference check (plain JAX)
    ref_max = jnp.max(x, axis=(2, 3), keepdims=True)
    ref_avg = jnp.mean(x, axis=(2, 3), keepdims=True)
    ref = jnp.concatenate([ref_max, ref_avg], axis=1)
    assert y.shape == (N, 2 * C, 1, 1), y.shape
    assert jnp.allclose(y, ref, atol=1e-5, rtol=1e-5)

    print("KERNEL_OK")
</pallas_src>

<mosaic_0001>
module attributes {stable_mosaic.version = 11 : i64} {
  func.func @kernel(%arg0: i32, %arg1: i32, %arg2: memref<1x4x256xf32, #tpu.memory_space<vmem>>, %arg3: memref<1x1x1x4xf32, #tpu.memory_space<vmem>>, %arg4: memref<1x1x1x4xf32, #tpu.memory_space<vmem>>) attributes {dimension_semantics = [#tpu.dimension_semantics<parallel>, #tpu.dimension_semantics<parallel>], iteration_bounds = array<i64: 2, 1>, scalar_prefetch = 0 : i64, scratch_operands = 0 : i64, tpu.core_type = #tpu.core_type<tc>, window_params = [{transform_indices = @transform_0, window_bounds = array<i64: 1, 4, 256>}, {transform_indices = @transform_1, window_bounds = array<i64: 1, 1, 1, 4>}, {transform_indices = @transform_2, window_bounds = array<i64: 1, 1, 1, 4>}]} {
    %c0 = arith.constant 0 : index
    %c0_0 = arith.constant 0 : index
    %c0_1 = arith.constant 0 : index
    %0 = vector.load %arg2[%c0, %c0_0, %c0_1] : memref<1x4x256xf32, #tpu.memory_space<vmem>>, vector<1x4x256xf32>
    %cst = arith.constant dense<0xFF800000> : vector<1x4xf32>
    %1 = vector.multi_reduction <maximumf>, %0, %cst [2] : vector<1x4x256xf32> to vector<1x4xf32>
    %c0_2 = arith.constant 0 : index
    %c0_3 = arith.constant 0 : index
    %c0_4 = arith.constant 0 : index
    %c0_5 = arith.constant 0 : index
    %2 = vector.load %arg3[%c0_2, %c0_3, %c0_4, %c0_5] : memref<1x1x1x4xf32, #tpu.memory_space<vmem>>, vector<1x1x1x4xf32>
    %3 = vector.shape_cast %2 : vector<1x1x1x4xf32> to vector<1x4xf32>
    %4 = vector.shape_cast %1 : vector<1x4xf32> to vector<1x1x1x4xf32>
    tpu.vector_store %arg3[%c0_2, %c0_3, %c0_4, %c0_5], %4 {strides = array<i32>} : memref<1x1x1x4xf32, #tpu.memory_space<vmem>>, vector<1x1x1x4xf32>,
    %cst_6 = arith.constant dense<0.000000e+00> : vector<1x4xf32>
    %5 = vector.multi_reduction <add>, %0, %cst_6 [2] : vector<1x4x256xf32> to vector<1x4xf32>
    %cst_7 = arith.constant 3.906250e-03 : f32
    %6 = vector.broadcast %cst_7 : f32 to vector<1x4xf32>
    %7 = arith.mulf %5, %6 : vector<1x4xf32>
    %c0_8 = arith.constant 0 : index
    %c0_9 = arith.constant 0 : index
    %c0_10 = arith.constant 0 : index
    %c0_11 = arith.constant 0 : index
    %8 = vector.load %arg4[%c0_8, %c0_9, %c0_10, %c0_11] : memref<1x1x1x4xf32, #tpu.memory_space<vmem>>, vector<1x1x1x4xf32>
    %9 = vector.shape_cast %8 : vector<1x1x1x4xf32> to vector<1x4xf32>
    %10 = vector.shape_cast %7 : vector<1x4xf32> to vector<1x1x1x4xf32>
    tpu.vector_store %arg4[%c0_8, %c0_9, %c0_10, %c0_11], %10 {strides = array<i32>} : memref<1x1x1x4xf32, #tpu.memory_space<vmem>>, vector<1x1x1x4xf32>,
    return
  }
  func.func @transform_0(%arg0: i32, %arg1: i32) -> (i32, i32, i32) {
    %c0_i32 = arith.constant 0 : i32
    %c0_i32_0 = arith.constant 0 : i32
    return %arg0, %arg1, %c0_i32 : i32, i32, i32
  }
  func.func @transform_1(%arg0: i32, %arg1: i32) -> (i32, i32, i32, i32) {
    %c0_i32 = arith.constant 0 : i32
    %c0_i32_0 = arith.constant 0 : i32
    %c0_i32_1 = arith.constant 0 : i32
    return %arg0, %arg1, %c0_i32, %c0_i32_0 : i32, i32, i32, i32
  }
  func.func @transform_2(%arg0: i32, %arg1: i32) -> (i32, i32, i32, i32) {
    %c0_i32 = arith.constant 0 : i32
    %c0_i32_0 = arith.constant 0 : i32
    %c0_i32_1 = arith.constant 0 : i32
    return %arg0, %arg1, %c0_i32, %c0_i32_0 : i32, i32, i32, i32
  }
}

</mosaic_0001>

<llo_original>
// kernel: tpu_custom_call.1
$region0: #{tpu_custom_call.1}
  #allocation0 [shape = 'u32[]', space=smem, size = 0x4, offset = 0x4, fixed_abs, tag = 'smem constant byte address 0x4 - core index']
  #allocation1 [shape = 'u32[144,128]{1,0:T(1,128)}', space=vmem, size = 0x12000, scoped, tag = 'internal scratch']
  %s0 = inlined_call_operand.hbm [shape: f32[2,4,256], index: 0, kind: input, shape index: {}]
  %s1 = inlined_call_operand.hbm [shape: f32[2,1,1,4], index: 1, kind: output, shape index: {0}]
  %s2 = inlined_call_operand.hbm [shape: f32[2,1,1,4], index: 2, kind: output, shape index: {1}]
  %3 = xla_tuple %s1, %s2
  %s4 = sld [smem:[#allocation0]]
  $region49: #{tpu_custom_call.1} parent=0
    _
  %s6 = ssub.s32 1, %s4
  %s7 = scalar_select 0, %s6, %s4
  $region1: #{tpu_custom_call.1} parent=0
    #allocation2 [shape = 'u8[8192]{0}', space=vmem, size = 0x2000, scoped, tag = 'input window, operand 0']
    #allocation3 [shape = 's32[2]{0}', space=sflag, size = 0x8, scoped, tag = 'scoped memory for tpu_custom_call.1']
    #allocation4 [shape = 's32[2]{0}', space=sflag, size = 0x8, scoped, tag = 'scoped memory for tpu_custom_call.1']
    #allocation5 [shape = 'u8[1024]{0}', space=vmem, size = 0x400, scoped, tag = 'output window, operand 0']
    #allocation6 [shape = 'u8[1024]{0}', space=vmem, size = 0x400, scoped, tag = 'output window, operand 1']
    #allocation7 [shape = 's32[2]{0}', space=sflag, size = 0x8, scoped, tag = 'scoped memory for tpu_custom_call.1']
    %8 = vsyncpa [#allocation3], 0
    %s9 = scalar_lea.sflag [#allocation3], 1
    %10 = vsyncpa %s9, 0
    %11 = vsyncpa [#allocation4], 0
    %s12 = scalar_lea.sflag [#allocation4], 1
    %13 = vsyncpa %s12, 0
    %14 = vsyncpa [#allocation7], 0
    %s15 = scalar_lea.sflag [#allocation7], 1
    %16 = vsyncpa %s15, 0
    loop: start=0, step=1, limit=4
    $region2: #{tpu_custom_call.1} parent=1 // loop_pre_header
      _
    $region3: #{tpu_custom_call.1} parent=1 // loop_header
      %s18 = sphi 0, %s22
      %p19 = scmp.ge.s32.totalorder %s18, 4
      %s25 = sphi 0, %s37
      %s26 = sphi 0, %s33
      %s27 = sphi 0, %s25
      %s28 = sphi 0, %s26
      %s29 = sphi 0, %s27
      %s30 = sphi 0, %s28
      %s42 = sphi 0, %s44
      %s45 = sphi 0, %s42
      %s46 = sphi 0, %s45
      %s62 = sphi 0, %s46
      %s70 = sphi 0, %s72
      %s73 = sphi 0, %s70
      %s74 = sphi 0, %s73
      %s90 = sphi 0, %s74
      %s98 = sphi 0, %s100
      %s101 = sphi 0, %s98
      %s102 = sphi 0, %s101
      %s118 = sphi 0, %s102
    $region4: #{tpu_custom_call.1} parent=1 // loop_header_branch
      %21 = sbr.rel (%p19) target = $region8
    $region5: #{tpu_custom_call.1} parent=1 // loop_body
      %s23 = ssub.s32 %s18, 1
      %s24 = ssub.s32 %s18, 2
      %s31 = sadd.s32 1, %s26
      %p32 = scmp.ge.s32.totalorder %s31, 1
      %s33 = scalar_select %p32, 0, %s31
      %s34 = sadd.s32 1, %s25
      %s35 = scalar_select %p32, %s34, %s25
      %p36 = scmp.ge.s32.totalorder %s35, 2
      %s37 = scalar_select %p36, 0, %s35
      %s38 = ssub.s32 %s25, %s37
      %s39 = ssub.s32 %s26, %s33
      %s40 = sor.u32 %s38, %s39
      %p41 = scmp.eq.s32.totalorder %s40, 0
      %s43 = sadd.s32 %s42, 1
      %s44 = scalar_select %p41, %s42, %s43
      %p47 = pneg %p41
      %p48 = scmp.eq.s32.totalorder %s18, 1
      %p49 = por %p47, %p48
      %p50 = scmp.ne.s32.totalorder %s42, %s45
      %p51 = scmp.eq.s32.totalorder %s18, 0
      %p52 = por %p50, %p51
      %p53 = scmp.ne.s32.totalorder %s42, %s45
      %p54 = scmp.eq.s32.totalorder %s23, 1
      %p55 = por %p53, %p54
      %p56 = scmp.ne.s32.totalorder %s45, %s46
      %p57 = scmp.eq.s32.totalorder %s23, 0
      %p58 = por %p56, %p57
      %p59 = scmp.ne.s32.totalorder %s45, %s46
      %p60 = scmp.eq.s32.totalorder %s24, 1
      %p61 = por %p59, %p60
      %p63 = scmp.ne.s32.totalorder %s46, %s62
      %p64 = scmp.eq.s32.totalorder %s24, 0
      %p65 = por %p63, %p64
      %s66 = ssub.s32 %s25, %s37
      %s67 = ssub.s32 %s26, %s33
      %s68 = sor.u32 %s66, %s67
      %p69 = scmp.eq.s32.totalorder %s68, 0
      %s71 = sadd.s32 %s70, 1
      %s72 = scalar_select %p69, %s70, %s71
      %p75 = pneg %p69
      %p76 = scmp.eq.s32.totalorder %s18, 1
      %p77 = por %p75, %p76
      %p78 = scmp.ne.s32.totalorder %s70, %s73
      %p79 = scmp.eq.s32.totalorder %s18, 0
      %p80 = por %p78, %p79
      %p81 = scmp.ne.s32.totalorder %s70, %s73
      %p82 = scmp.eq.s32.totalorder %s23, 1
      %p83 = por %p81, %p82
      %p84 = scmp.ne.s32.totalorder %s73, %s74
      %p85 = scmp.eq.s32.totalorder %s23, 0
      %p86 = por %p84, %p85
      %p87 = scmp.ne.s32.totalorder %s73, %s74
      %p88 = scmp.eq.s32.totalorder %s24, 1
      %p89 = por %p87, %p88
      %p91 = scmp.ne.s32.totalorder %s74, %s90
      %p92 = scmp.eq.s32.totalorder %s24, 0
      %p93 = por %p91, %p92
      %s94 = ssub.s32 %s25, %s37
      %s95 = ssub.s32 %s26, %s33
      %s96 = sor.u32 %s94, %s95
      %p97 = scmp.eq.s32.totalorder %s96, 0
      %s99 = sadd.s32 %s98, 1
      %s100 = scalar_select %p97, %s98, %s99
      %p103 = pneg %p97
      %p104 = scmp.eq.s32.totalorder %s18, 1
      %p105 = por %p103, %p104
      %p106 = scmp.ne.s32.totalorder %s98, %s101
      %p107 = scmp.eq.s32.totalorder %s18, 0
      %p108 = por %p106, %p107
      %p109 = scmp.ne.s32.totalorder %s98, %s101
      %p110 = scmp.eq.s32.totalorder %s23, 1
      %p111 = por %p109, %p110
      %p112 = scmp.ne.s32.totalorder %s101, %s102
      %p113 = scmp.eq.s32.totalorder %s23, 0
      %p114 = por %p112, %p113
      %p115 = scmp.ne.s32.totalorder %s101, %s102
      %p116 = scmp.eq.s32.totalorder %s24, 1
      %p117 = por %p115, %p116
      %p119 = scmp.ne.s32.totalorder %s102, %s118
      %p120 = scmp.eq.s32.totalorder %s24, 0
      %p121 = por %p119, %p120
      %p122 = scmp.le.s32.totalorder 1, %s18
      %p123 = scmp.lt.s32.totalorder %s18, 3
      %p124 = pnand %p122, %p123
      %p125 = pneg %p124
      // Predicated region
      $region9: #{tpu_custom_call.1} parent=5 // pred_check
        _
      $region10: #{tpu_custom_call.1} parent=5 // pred_check_branch
        %127 = sbr.rel (%p124) target = $region12
      $region11: #{tpu_custom_call.1} parent=5 // pred_region
        %s128 = ssub.s32 %s18, 1
      $region12: #{tpu_custom_call.1} parent=5 // pred_fallthru
        _
      %p129 = scmp.lt.s32.totalorder %s18, 2
      // Predicated region
      $region13: #{tpu_custom_call.1} parent=5 // pred_check
        %p130 = pneg %p129
      $region14: #{tpu_custom_call.1} parent=5 // pred_check_branch
        %132 = sbr.rel (%p130) target = $region16
      $region15: #{tpu_custom_call.1} parent=5 // pred_region
        // Predicated region
        $region17: #{tpu_custom_call.1} parent=15 // pred_check
          %p133 = pneg %p52
        $region18: #{tpu_custom_call.1} parent=15 // pred_check_branch
          %135 = sbr.rel (%p133) target = $region20
        $region19: #{tpu_custom_call.1} parent=15 // pred_region
          %s136 = sand.u32 %s42, 1
          %s137 = scalar_lea.sflag [#allocation3], %s136
          %s138 = sand.u32 %s42, 1
          %s139 = smul.addr %s138, 8
          %s140 = scalar_lea.vmem [#allocation2], %s139
          %s142 = ssub.s32 128, 128
          %143 = vsyncadd %s137, %s142
          %s144 = smul.addr %s26, 2
          %s145 = smul.addr %s25, 2
          %s146 = sadd.s32 %s144, %s145
          %s147 = smul.addr %s146, 64
          %s148 = scalar_lea.hbm %s0, %s147
          %s150 = sshll.u32 %s140, 4
          %s151 = int_to_ptr.vmem [resolvable:$true] %s150
          %153 = dma.hbm_to_vmem [thread:$0]  %s148, 128, %s151, %s137
        $region20: #{tpu_custom_call.1} parent=15 // pred_fallthru
          _
      $region16: #{tpu_custom_call.1} parent=5 // pred_fallthru
        _
      %p154 = scmp.le.s32.totalorder 1, %s18
      %p155 = scmp.lt.s32.totalorder %s18, 3
      %p156 = pnand %p154, %p155
      %p157 = pneg %p156
      // Predicated region
      $region21: #{tpu_custom_call.1} parent=5 // pred_check
        _
      $region22: #{tpu_custom_call.1} parent=5 // pred_check_branch
        %159 = sbr.rel (%p156) target = $region24
      $region23: #{tpu_custom_call.1} parent=5 // pred_region
        %s160 = ssub.s32 %s18, 1
        %s161 = sand.u32 %s45, 1
        %s162 = scalar_lea.sflag [#allocation3], %s161
        %s163 = sand.u32 %s45, 1
        %s164 = smul.addr %s163, 8
        %s165 = scalar_lea.vmem [#allocation2], %s164
        // Predicated region
        $region25: #{tpu_custom_call.1} parent=23 // pred_check
          %p166 = pneg %p58
        $region26: #{tpu_custom_call.1} parent=23 // pred_check_branch
          %168 = sbr.rel (%p166) target = $region28
        $region27: #{tpu_custom_call.1} parent=23 // pred_region
          %169 = dma.done %s162, 128
        $region28: #{tpu_custom_call.1} parent=23 // pred_fallthru
          _
        %s170 = sand.u32 %s45, 1
        %s171 = scalar_lea.sflag [#allocation3], %s170
        %s172 = sand.u32 %s45, 1
        %s173 = smul.addr %s172, 8
        %s174 = scalar_lea.vmem [#allocation2], %s173
        %p175 = pneg %p58
        %p176 = pneg %p55
        %p177 = pneg %p86
        %p178 = pneg %p83
        %s179 = sand.u32 %s73, 1
        %s180 = scalar_lea.sflag [#allocation4], %s179
        %s181 = sand.u32 %s73, 1
        %s182 = scalar_lea.vmem [#allocation5], %s181
        %p183 = pneg %p114
        %p184 = pneg %p111
        %s185 = sand.u32 %s101, 1
        %s186 = scalar_lea.sflag [#allocation7], %s185
        %s187 = sand.u32 %s101, 1
        %s188 = scalar_lea.vmem [#allocation6], %s187
        %v189 = vld [vmem:[%s165] sm:$0xff]
        %v191 = vcombine.high %v189, %v189
        %vm193 = vcmask 1043456
        %v194 = vsel %vm193, %v189, -inf
        %v195 = vsel %vm193, %v191, -inf
        %v196 = vmax.f32 %v194, %v195
        %197 = vmax.xlane.f32.xlu0 %v196
        %v198 = vpop.xlane.xlu0 %197
        %v200 = vlaneseq
        %v201 = vand.u32 %v200, 127
        %v202 = vlaneseq
        %v203 = vshrl.u32 %v202, 7
        %v204 = vsub.s32 %v201, %v203
        %v205 = vrot.slane %v198, %v204
        %vm207 = vcmask 24576
        %208 = vst.msk [vmem:[%s182] sm:$0x1] %vm207, %v205
        %v209 = vsel %vm193, %v189, 0.0
        %v210 = vsel %vm193, %v191, 0.0
        %v211 = vadd.f32 %v209, %v210
        %212 = vadd.xlane.f32.xlu0 %v211
        %v213 = vpop.xlane.xlu0 %212
        %v214 = vmul.f32 %v213, 0.00390625
        %v216 = vlaneseq
        %v217 = vshrl.u32 %v216, 7
        %v218 = vsub.s32 %v201, %v217
        %v219 = vrot.slane %v214, %v218
        %221 = vst.msk [vmem:[%s188] sm:$0x1] %vm207, %v219
        %s222 = sand.u32 %s73, 1
        %s223 = scalar_lea.sflag [#allocation4], %s222
        %s224 = sand.u32 %s73, 1
        %s225 = scalar_lea.vmem [#allocation5], %s224
        %s226 = sand.u32 %s101, 1
        %s227 = scalar_lea.sflag [#allocation7], %s226
        %s228 = sand.u32 %s101, 1
        %s229 = scalar_lea.vmem [#allocation6], %s228
        // Predicated region
        $region29: #{tpu_custom_call.1} parent=23 // pred_check
          %p230 = pneg %p83
        $region30: #{tpu_custom_call.1} parent=23 // pred_check_branch
          %232 = sbr.rel (%p230) target = $region32
        $region31: #{tpu_custom_call.1} parent=23 // pred_region
          %s234 = ssub.s32 16, 16
          %235 = vsyncadd %s223, %s234
          %s236 = sadd.s32 %s28, %s27
          %s237 = smul.addr %s236, 16
          %s238 = scalar_lea.hbm %s1, %s237
          %s240 = sshll.u32 %s225, 4
          %s241 = int_to_ptr.vmem [resolvable:$true] %s240
          %243 = dma.vmem_to_hbm [thread:$0]  %s241, 16, %s238, %s223
        $region32: #{tpu_custom_call.1} parent=23 // pred_fallthru
          _
        // Predicated region
        $region33: #{tpu_custom_call.1} parent=23 // pred_check
          %p244 = pneg %p111
        $region34: #{tpu_custom_call.1} parent=23 // pred_check_branch
          %246 = sbr.rel (%p244) target = $region36
        $region35: #{tpu_custom_call.1} parent=23 // pred_region
          %s248 = ssub.s32 16, 16
          %249 = vsyncadd %s227, %s248
          %s250 = sadd.s32 %s28, %s27
          %s251 = smul.addr %s250, 16
          %s252 = scalar_lea.hbm %s2, %s251
          %s254 = sshll.u32 %s229, 4
          %s255 = int_to_ptr.vmem [resolvable:$true] %s254
          %257 = dma.vmem_to_hbm [thread:$0]  %s255, 16, %s252, %s227
        $region36: #{tpu_custom_call.1} parent=23 // pred_fallthru
          _
      $region24: #{tpu_custom_call.1} parent=5 // pred_fallthru
        _
      %p258 = scmp.le.s32.totalorder 2, %s18
      // Predicated region
      $region37: #{tpu_custom_call.1} parent=5 // pred_check
        %p259 = pneg %p258
      $region38: #{tpu_custom_call.1} parent=5 // pred_check_branch
        %261 = sbr.rel (%p259) target = $region40
      $region39: #{tpu_custom_call.1} parent=5 // pred_region
        %s262 = ssub.s32 %s18, 2
        // Predicated region
        $region41: #{tpu_custom_call.1} parent=39 // pred_check
          %p263 = pneg %p89
        $region42: #{tpu_custom_call.1} parent=39 // pred_check_branch
          %265 = sbr.rel (%p263) target = $region44
        $region43: #{tpu_custom_call.1} parent=39 // pred_region
          %s266 = sand.u32 %s74, 1
          %s267 = scalar_lea.sflag [#allocation4], %s266
          %s268 = sand.u32 %s74, 1
          %s269 = scalar_lea.vmem [#allocation5], %s268
          %270 = dma.done %s267, 16
        $region44: #{tpu_custom_call.1} parent=39 // pred_fallthru
          _
        // Predicated region
        $region45: #{tpu_custom_call.1} parent=39 // pred_check
          %p271 = pneg %p117
        $region46: #{tpu_custom_call.1} parent=39 // pred_check_branch
          %273 = sbr.rel (%p271) target = $region48
        $region47: #{tpu_custom_call.1} parent=39 // pred_region
          %s274 = sand.u32 %s102, 1
          %s275 = scalar_lea.sflag [#allocation7], %s274
          %s276 = sand.u32 %s102, 1
          %s277 = scalar_lea.vmem [#allocation6], %s276
          %278 = dma.done %s275, 16
        $region48: #{tpu_custom_call.1} parent=39 // pred_fallthru
          _
      $region40: #{tpu_custom_call.1} parent=5 // pred_fallthru
        _
    $region6: #{tpu_custom_call.1} parent=1 // loop_footer
      %s22 = sadd.s32 1, %s18
    $region7: #{tpu_custom_call.1} parent=1 // loop_footer_branch
      %17 = sbr.rel target = $region3
    $region8: #{tpu_custom_call.1} parent=1 // loop_exit
      _
    %279 = vsyncpa [#allocation3], 1
    %s280 = scalar_lea.sflag [#allocation3], 1
    %281 = vsyncpa %s280, 1
    %282 = vsyncpa [#allocation4], 1
    %s283 = scalar_lea.sflag [#allocation4], 1
    %284 = vsyncpa %s283, 1
    %285 = vsyncpa [#allocation7], 1
    %s286 = scalar_lea.sflag [#allocation7], 1
    %287 = vsyncpa %s286, 1

</llo_original>
